<compile_context>
chip_gen: v7x
topology: tpu7x:2x2x1
jax: 0.10.0
libtpu: 0.0.40
codegen_flags: <defaults>
</compile_context>

<pallas_src>
import functools

import jax
import jax.numpy as jnp
from jax import lax
from jax.experimental import pallas as pl
from jax.experimental.pallas import tpu as pltpu


_VMEM_LIMIT_BYTES = 40 * 1024 * 1024   # explicit scoped-VMEM limit (v5e/v6e/v7x safe)
_SDPA_VMEM_BUDGET = 24 * 1024 * 1024   # target per-step working set for SDPA tiling


def _round_up(x, m):
    return ((x + m - 1) // m) * m


def _largest_divisor(total, base, cap):
    """Largest divisor of `total` that is a multiple of `base` and <= cap.

    `total` must already be a multiple of `base`."""
    best = base
    d = base
    limit = min(cap, total)
    while d <= limit:
        if total % d == 0:
            best = d
        d += base
    return best


# ----------------------------------------------------------------------------
# Kernel 1: tiled dense / linear layer  y = x @ W_t + b   (W_t is (Din, Dout))
# ----------------------------------------------------------------------------
def _linear_kernel(x_ref, w_ref, b_ref, o_ref, acc_ref):
    # x_ref: (tm, tk), w_ref: (tk, tn), b_ref: (1, tn), o_ref/acc_ref: (tm, tn)
    @pl.when(pl.program_id(2) == 0)
    def _():
        acc_ref[...] = jnp.zeros_like(acc_ref)

    acc_ref[...] += jnp.dot(
        x_ref[...], w_ref[...], preferred_element_type=jnp.float32
    )

    # Bias add folded into the epilogue (single lane-dense store per tile).
    @pl.when(pl.program_id(2) == pl.num_programs(2) - 1)
    def _():
        o_ref[...] = (acc_ref[...] + b_ref[...]).astype(o_ref.dtype)


def pallas_linear(x, w_t, b, *, out_dtype=None, tm_max=512, tn_max=512, tk_max=1024):
    """y = x @ w_t + b.  x: (M, Din), w_t: (Din, Dout), b: (Dout,) f32."""
    M, Din = x.shape
    Dout = w_t.shape[1]
    if out_dtype is None:
        out_dtype = x.dtype

    Mp = _round_up(M, 8)
    Kp = _round_up(Din, 128)
    Np = _round_up(Dout, 128)

    # Pad only dims that violate (8,128) alignment; tiles are exact divisors of
    # the padded dims so tile choice never forces additional padding copies.
    if (Mp, Kp) != (M, Din):
        x = jnp.pad(x, ((0, Mp - M), (0, Kp - Din)))
    if (Kp, Np) != (Din, Dout):
        w_t = jnp.pad(w_t, ((0, Kp - Din), (0, Np - Dout)))
    bp = (jnp.pad(b, (0, Np - Dout)) if Np != Dout else b).reshape(1, Np)
    bp = bp.astype(jnp.float32)

    tm = _largest_divisor(Mp, 8, tm_max)
    tn = _largest_divisor(Np, 128, tn_max)
    tk = _largest_divisor(Kp, 128, tk_max)

    out = pl.pallas_call(
        _linear_kernel,
        out_shape=jax.ShapeDtypeStruct((Mp, Np), out_dtype),
        grid=(Mp // tm, Np // tn, Kp // tk),
        in_specs=[
            pl.BlockSpec((tm, tk), lambda i, j, kk: (i, kk)),
            pl.BlockSpec((tk, tn), lambda i, j, kk: (kk, j)),
            pl.BlockSpec((1, tn), lambda i, j, kk: (0, j)),
        ],
        out_specs=pl.BlockSpec((tm, tn), lambda i, j, kk: (i, j)),
        scratch_shapes=[pltpu.VMEM((tm, tn), jnp.float32)],
        compiler_params=pltpu.CompilerParams(
            dimension_semantics=("parallel", "parallel", "arbitrary"),
            vmem_limit_bytes=_VMEM_LIMIT_BYTES,
        ),
    )(x, w_t, bp)
    if (Mp, Np) != (M, Dout):
        out = out[:M, :Dout]
    return out


# ----------------------------------------------------------------------------
# Kernel 2: scaled dot-product attention over the projection layout
#   Grid = (batch, n_q tile).  Q/K/V blocks come straight from the
#   (batch, n, n_head*d) projection output (no head permute); heads are split
#   by static column slices in VMEM; the output is written already merged as
#   (batch, n_q, n_head*d_v) so the store is lane-dense and directly feeds Wo.
# ----------------------------------------------------------------------------
def _sdpa_kernel(q_ref, k_ref, v_ref, *out_refs, n_head, d_k, d_v, inv_scale,
                 compute_dtype, with_attn):
    if with_attn:
        attn_ref, out_ref = out_refs
    else:
        (out_ref,) = out_refs

    q = q_ref[0]   # (tq, n_head*d_k)  compute dtype
    k = k_ref[0]   # (n_k, n_head*d_k)
    v = v_ref[0]   # (n_k, n_head*d_v)

    head_outs = []
    for h in range(n_head):
        qh = q[:, h * d_k:(h + 1) * d_k] * inv_scale   # scale q (tq*d), not scores
        kh = k[:, h * d_k:(h + 1) * d_k]
        # (tq, n_k) scores; contraction over the last dims (no explicit k.T).
        s = lax.dot_general(qh, kh, (((1,), (1,)), ((), ())),
                            preferred_element_type=jnp.float32)
        m = jnp.max(s, axis=-1, keepdims=True)
        p = jnp.exp(s - m)
        denom = jnp.sum(p, axis=-1, keepdims=True)
        # EUP approximate reciprocal + one Newton step -> f32-accurate softmax
        # denominator with the seed off the VALU critical path.
        r = pl.reciprocal(denom, approx=True)
        r = r * (2.0 - denom * r)
        attn_h = p * r                                  # (tq, n_k) f32
        if with_attn:
            attn_ref[h, 0] = attn_h.astype(attn_ref.dtype)
        vh = v[:, h * d_v:(h + 1) * d_v]                # (n_k, d_v)
        head_outs.append(jnp.dot(attn_h.astype(compute_dtype), vh,
                                 preferred_element_type=jnp.float32))
    # Single merged, lane-dense store: columns [h*d_v:(h+1)*d_v] hold head h.
    out_ref[0] = jnp.concatenate(head_outs, axis=-1).astype(out_ref.dtype)


def pallas_sdpa(q3, k3, v3, *, n_head, d_k, d_v, scale, return_attn=True,
                attn_dtype=jnp.float32):
    """q3: (batch, n_q, n_head*d_k), k3/v3: (batch, n_k, n_head*d_{k,v}).

    Returns (attn, out):
      attn: (n_head, batch, n_q, n_k) in attn_dtype (or None),
      out:  (batch, n_q, n_head*d_v) in the compute dtype (head-merged layout).
    """
    batch, n_q, Dq = q3.shape
    _, n_k, _ = k3.shape
    Dv = v3.shape[2]
    cdt = q3.dtype
    in_b = jnp.dtype(cdt).itemsize
    attn_b = jnp.dtype(attn_dtype).itemsize

    # ---- q-tile sized against an explicit VMEM budget (double buffering and
    #      in-kernel f32 temporaries included) --------------------------------
    def step_bytes(tq):
        bts = 2 * n_k * (Dq + Dv) * in_b           # K + V blocks (x2 buffers)
        bts += 2 * tq * Dq * in_b                  # Q block
        bts += 2 * tq * Dv * in_b                  # out block
        if return_attn:
            bts += 2 * n_head * tq * n_k * attn_b  # attn block
        bts += 3 * tq * n_k * 4                    # per-head s / p / attn f32 temps
        bts += 2 * tq * Dv * 4                     # per-head outputs + concat
        return bts

    tq = min(_round_up(n_q, 8), 512)
    while tq > 8 and step_bytes(tq) > _SDPA_VMEM_BUDGET:
        tq = max(8, _round_up(tq // 2, 8))

    nqp = _round_up(n_q, tq)
    if nqp != n_q:
        q3 = jnp.pad(q3, ((0, 0), (0, nqp - n_q), (0, 0)))

    kernel = functools.partial(
        _sdpa_kernel, n_head=n_head, d_k=d_k, d_v=d_v,
        inv_scale=1.0 / scale, compute_dtype=cdt, with_attn=return_attn)

    in_specs = [
        pl.BlockSpec((1, tq, Dq), lambda b, qi: (b, qi, 0)),
        pl.BlockSpec((1, n_k, Dq), lambda b, qi: (b, 0, 0)),
        pl.BlockSpec((1, n_k, Dv), lambda b, qi: (b, 0, 0)),
    ]
    cp = pltpu.CompilerParams(
        dimension_semantics=("parallel", "parallel"),
        vmem_limit_bytes=_VMEM_LIMIT_BYTES,
    )
    grid = (batch, nqp // tq)
    out_spec = pl.BlockSpec((1, tq, Dv), lambda b, qi: (b, qi, 0))
    out_shape = jax.ShapeDtypeStruct((batch, nqp, Dv), cdt)

    if return_attn:
        attn_spec = pl.BlockSpec((n_head, 1, tq, n_k), lambda b, qi: (0, b, qi, 0))
        attn_shape = jax.ShapeDtypeStruct((n_head, batch, nqp, n_k), attn_dtype)
        attn, out = pl.pallas_call(
            kernel,
            out_shape=(attn_shape, out_shape),
            grid=grid,
            in_specs=in_specs,
            out_specs=(attn_spec, out_spec),
            compiler_params=cp,
        )(q3, k3, v3)
        if nqp != n_q:
            attn = attn[:, :, :n_q, :]
            out = out[:, :n_q, :]
        return attn, out

    out = pl.pallas_call(
        kernel,
        out_shape=out_shape,
        grid=grid,
        in_specs=in_specs,
        out_specs=out_spec,
        compiler_params=cp,
    )(q3, k3, v3)
    if nqp != n_q:
        out = out[:, :n_q, :]
    return None, out


# ----------------------------------------------------------------------------
# MultiHeadAttention forward (parameters held in a dict)
# ----------------------------------------------------------------------------
def init_mha_params(key, n_head, d_k_, d_v_, d_k, d_v, d_o):
    """Deterministic nn.Linear-style init: U(-1/sqrt(fan_in), 1/sqrt(fan_in))."""

    def linear_init(k, fan_in, fan_out):
        kw, kb = jax.random.split(k)
        bound = 1.0 / jnp.sqrt(fan_in)
        w = jax.random.uniform(kw, (fan_out, fan_in), jnp.float32, -bound, bound)
        b = jax.random.uniform(kb, (fan_out,), jnp.float32, -bound, bound)
        return w, b

    k1, k2, k3, k4 = jax.random.split(key, 4)
    wq, bq = linear_init(k1, d_k_, n_head * d_k)
    wk, bk = linear_init(k2, d_k_, n_head * d_k)
    wv, bv = linear_init(k3, d_v_, n_head * d_v)
    wo, bo = linear_init(k4, n_head * d_v, d_o)
    return dict(wq=wq, bq=bq, wk=wk, bk=bk, wv=wv, bv=bv, wo=wo, bo=bo)


def multi_head_attention(params, q, k, v, *, n_head, d_k, d_v, return_attn=True,
                         compute_dtype=jnp.bfloat16, attn_dtype=None):
    # TODO(synk): boolean attention mask (masked_fill with -inf) is not wired
    # in; only the module default (mask=None) is implemented.
    batch, n_q, d_q_ = q.shape
    _, n_k, d_k_ = k.shape
    _, n_v, d_v_ = v.shape
    scale = float(d_k) ** 0.5
    cdt = compute_dtype
    if attn_dtype is None:
        attn_dtype = cdt   # bf16 attn writeback by default (O(n_q*n_k) savings)

    # Q / K / V projections: bf16 operands, f32 accumulation, bf16 outputs.
    qp = pallas_linear(q.reshape(batch * n_q, d_q_).astype(cdt),
                       params["wq"].T.astype(cdt), params["bq"], out_dtype=cdt)
    kp = pallas_linear(k.reshape(batch * n_k, d_k_).astype(cdt),
                       params["wk"].T.astype(cdt), params["bk"], out_dtype=cdt)
    vp = pallas_linear(v.reshape(batch * n_v, d_v_).astype(cdt),
                       params["wv"].T.astype(cdt), params["bv"], out_dtype=cdt)

    # No head-permute round trip: SDPA consumes (batch, n, n_head*d) directly
    # and emits its output already merged as (batch, n_q, n_head*d_v).
    q3 = qp.reshape(batch, n_q, n_head * d_k)
    k3 = kp.reshape(batch, n_k, n_head * d_k)
    v3 = vp.reshape(batch, n_v, n_head * d_v)

    attn, out = pallas_sdpa(q3, k3, v3, n_head=n_head, d_k=d_k, d_v=d_v,
                            scale=scale, return_attn=return_attn,
                            attn_dtype=attn_dtype)
    if attn is not None:
        # (n_head, batch, n_q, n_k) -> (n_head*batch, n_q, n_k): free reshape,
        # matches the PyTorch head-major ordering.
        attn = attn.reshape(n_head * batch, n_q, n_k)

    out = pallas_linear(out.reshape(batch * n_q, n_head * d_v),
                        params["wo"].T.astype(cdt), params["bo"],
                        out_dtype=jnp.float32).reshape(batch, n_q, -1)
    return attn, out


# ----------------------------------------------------------------------------
# Pure-JAX reference for sanity check
# ----------------------------------------------------------------------------
def reference_mha(params, q, k, v, *, n_head, d_k, d_v):
    batch, n_q, _ = q.shape
    n_k = k.shape[1]
    scale = float(d_k) ** 0.5

    def lin(x, w, b):
        return x @ w.T + b

    qp = lin(q, params["wq"], params["bq"])
    kp = lin(k, params["wk"], params["bk"])
    vp = lin(v, params["wv"], params["bv"])

    def split(x, n, d):
        return x.reshape(batch, n, n_head, d).transpose(2, 0, 1, 3).reshape(-1, n, d)

    qh, kh, vh = split(qp, n_q, d_k), split(kp, n_k, d_k), split(vp, n_k, d_v)
    u = jnp.einsum("gqd,gkd->gqk", qh, kh) / scale
    attn = jax.nn.softmax(u, axis=-1)
    out = jnp.einsum("gqk,gkd->gqd", attn, vh)
    out = (
        out.reshape(n_head, batch, n_q, d_v)
        .transpose(1, 2, 0, 3)
        .reshape(batch, n_q, n_head * d_v)
    )
    out = lin(out, params["wo"], params["bo"])
    return attn, out


if __name__ == "__main__":
    # Small, module-consistent shapes.
    n_head, d_k_, d_v_, d_k, d_v, d_o = 2, 16, 16, 8, 8, 16
    batch, n_q, n_k = 2, 8, 8

    key = jax.random.PRNGKey(0)
    kp_, kq, kk, kv = jax.random.split(key, 4)
    params = init_mha_params(kp_, n_head, d_k_, d_v_, d_k, d_v, d_o)

    q = jax.random.normal(kq, (batch, n_q, d_k_), jnp.float32)
    k = jax.random.normal(kk, (batch, n_k, d_k_), jnp.float32)
    v = jax.random.normal(kv, (batch, n_k, d_v_), jnp.float32)

    attn_ref_, out_ref_ = reference_mha(params, q, k, v, n_head=n_head, d_k=d_k, d_v=d_v)

    # --- f32 compute path: exact parity with the reference ---
    attn32, out32 = multi_head_attention(
        params, q, k, v, n_head=n_head, d_k=d_k, d_v=d_v,
        compute_dtype=jnp.float32)
    jax.block_until_ready((attn32, out32))
    assert attn32.shape == (n_head * batch, n_q, n_k)
    assert out32.shape == (batch, n_q, d_o)
    assert jnp.allclose(attn32, attn_ref_, atol=1e-5, rtol=1e-5)
    assert jnp.allclose(out32, out_ref_, atol=1e-5, rtol=1e-5)

    # --- default bf16 MXU path (f32 accumulation): relaxed tolerance ---
    attn16, out16 = multi_head_attention(
        params, q, k, v, n_head=n_head, d_k=d_k, d_v=d_v)
    jax.block_until_ready((attn16, out16))
    assert attn16.shape == (n_head * batch, n_q, n_k)
    assert out16.shape == (batch, n_q, d_o)
    assert jnp.allclose(attn16.astype(jnp.float32), attn_ref_, atol=5e-2, rtol=5e-2)
    assert jnp.allclose(out16, out_ref_, atol=5e-2, rtol=5e-2)

    # --- output-only path (no O(seq^2) attn writeback) ---
    _, out_na = multi_head_attention(
        params, q, k, v, n_head=n_head, d_k=d_k, d_v=d_v, return_attn=False)
    jax.block_until_ready(out_na)
    assert jnp.allclose(out_na, out_ref_, atol=5e-2, rtol=5e-2)

    print("KERNEL_OK")
</pallas_src>

<mosaic_0001>
module attributes {stable_mosaic.version = 11 : i64} {
  func.func @_linear_kernel(%arg0: i32, %arg1: i32, %arg2: i32, %arg3: memref<16x128xf32, #tpu.memory_space<vmem>>, %arg4: memref<128x128xf32, #tpu.memory_space<vmem>>, %arg5: memref<1x128xf32, #tpu.memory_space<vmem>>, %arg6: memref<16x128xf32, #tpu.memory_space<vmem>>, %arg7: memref<16x128xf32, #tpu.memory_space<vmem>>) attributes {dimension_semantics = [#tpu.dimension_semantics<parallel>, #tpu.dimension_semantics<parallel>, #tpu.dimension_semantics<arbitrary>], iteration_bounds = array<i64: 1, 1, 1>, scalar_prefetch = 0 : i64, scratch_operands = 1 : i64, tpu.core_type = #tpu.core_type<tc>, window_params = [{transform_indices = @transform_0, window_bounds = array<i64: 16, 128>}, {transform_indices = @transform_1, window_bounds = array<i64: 128, 128>}, {transform_indices = @transform_2, window_bounds = array<i64: 1, 128>}, {transform_indices = @transform_3, window_bounds = array<i64: 16, 128>}]} {
    %c0_i32 = arith.constant 0 : i32
    %0 = arith.cmpi eq, %arg2, %c0_i32 : i32
    %1 = arith.extui %0 : i1 to i32
    %c0_i32_0 = arith.constant 0 : i32
    %2 = arith.cmpi ne, %1, %c0_i32_0 : i32
    scf.if %2 {
      %cst_10 = arith.constant 0.000000e+00 : f32
      %12 = vector.broadcast %cst_10 : f32 to vector<16x128xf32>
      %c0_11 = arith.constant 0 : index
      %c0_12 = arith.constant 0 : index
      %13 = vector.load %arg7[%c0_11, %c0_12] : memref<16x128xf32, #tpu.memory_space<vmem>>, vector<16x128xf32>
      tpu.vector_store %arg7[%c0_11, %c0_12], %12 {strides = array<i32>} : memref<16x128xf32, #tpu.memory_space<vmem>>, vector<16x128xf32>,
    } else {
    }
    %c0 = arith.constant 0 : index
    %c0_1 = arith.constant 0 : index
    %3 = vector.load %arg7[%c0, %c0_1] : memref<16x128xf32, #tpu.memory_space<vmem>>, vector<16x128xf32>
    %c0_2 = arith.constant 0 : index
    %c0_3 = arith.constant 0 : index
    %4 = vector.load %arg3[%c0_2, %c0_3] : memref<16x128xf32, #tpu.memory_space<vmem>>, vector<16x128xf32>
    %c0_4 = arith.constant 0 : index
    %c0_5 = arith.constant 0 : index
    %5 = vector.load %arg4[%c0_4, %c0_5] : memref<128x128xf32, #tpu.memory_space<vmem>>, vector<128x128xf32>
    %cst = arith.constant dense<0.000000e+00> : vector<16x128xf32>
    %6 = tpu.matmul %4, %5, %cst {dimension_numbers = #tpu.dot_dimension_numbers<[1], [0], [0], [1], [0, 0, 1, 1], [], []>} : vector<16x128xf32>, vector<128x128xf32>, vector<16x128xf32> -> vector<16x128xf32>
    %7 = arith.addf %3, %6 : vector<16x128xf32>
    %c0_6 = arith.constant 0 : index
    %c0_7 = arith.constant 0 : index
    %8 = vector.load %arg7[%c0_6, %c0_7] : memref<16x128xf32, #tpu.memory_space<vmem>>, vector<16x128xf32>
    tpu.vector_store %arg7[%c0_6, %c0_7], %7 {strides = array<i32>} : memref<16x128xf32, #tpu.memory_space<vmem>>, vector<16x128xf32>,
    %c0_i32_8 = arith.constant 0 : i32
    %9 = arith.cmpi eq, %arg2, %c0_i32_8 : i32
    %10 = arith.extui %9 : i1 to i32
    %c0_i32_9 = arith.constant 0 : i32
    %11 = arith.cmpi ne, %10, %c0_i32_9 : i32
    scf.if %11 {
      %c0_10 = arith.constant 0 : index
      %c0_11 = arith.constant 0 : index
      %12 = vector.load %arg7[%c0_10, %c0_11] : memref<16x128xf32, #tpu.memory_space<vmem>>, vector<16x128xf32>
      %c0_12 = arith.constant 0 : index
      %c0_13 = arith.constant 0 : index
      %13 = vector.load %arg5[%c0_12, %c0_13] : memref<1x128xf32, #tpu.memory_space<vmem>>, vector<1x128xf32>
      %14 = vector.broadcast %13 : vector<1x128xf32> to vector<16x128xf32>
      %15 = arith.addf %12, %14 : vector<16x128xf32>
      %c0_14 = arith.constant 0 : index
      %c0_15 = arith.constant 0 : index
      %16 = vector.load %arg6[%c0_14, %c0_15] : memref<16x128xf32, #tpu.memory_space<vmem>>, vector<16x128xf32>
      tpu.vector_store %arg6[%c0_14, %c0_15], %15 {strides = array<i32>} : memref<16x128xf32, #tpu.memory_space<vmem>>, vector<16x128xf32>,
    } else {
    }
    return
  }
  func.func @transform_0(%arg0: i32, %arg1: i32, %arg2: i32) -> (i32, i32) {
    %c0_i32 = arith.constant 0 : i32
    return %arg0, %arg2 : i32, i32
  }
  func.func @transform_1(%arg0: i32, %arg1: i32, %arg2: i32) -> (i32, i32) {
    %c0_i32 = arith.constant 0 : i32
    return %arg2, %arg1 : i32, i32
  }
  func.func @transform_2(%arg0: i32, %arg1: i32, %arg2: i32) -> (i32, i32) {
    %c0_i32 = arith.constant 0 : i32
    %c0_i32_0 = arith.constant 0 : i32
    return %c0_i32, %arg1 : i32, i32
  }
  func.func @transform_3(%arg0: i32, %arg1: i32, %arg2: i32) -> (i32, i32) {
    %c0_i32 = arith.constant 0 : i32
    return %arg0, %arg1 : i32, i32
  }
}

</mosaic_0001>

<llo_original>
// kernel: tpu_custom_call.1
$region0: #{tpu_custom_call.1}
  #allocation0 [shape = 'u32[]', space=smem, size = 0x4, offset = 0x4, fixed_abs, tag = 'smem constant byte address 0x4 - core index']
  #allocation1 [shape = 'u32[144,128]{1,0:T(1,128)}', space=vmem, size = 0x12000, scoped, tag = 'internal scratch']
  #allocation2 [shape = 'f32[16,128]{1,0:T(8,128)}', space=vmem, size = 0x2000, scoped, tag = 'scratch operand']
  %s0 = inlined_call_operand.hbm [shape: f32[16,128], index: 0, kind: input, shape index: {}]
  %s1 = inlined_call_operand.hbm [shape: f32[128,128], index: 1, kind: input, shape index: {}]
  %s2 = inlined_call_operand.vmem [shape: f32[1,128], index: 2, kind: input, shape index: {}]
  %s3 = inlined_call_operand.hbm [shape: f32[16,128], index: 3, kind: output, shape index: {}]
  %s4 = sld [smem:[#allocation0]]
  $region38: #{tpu_custom_call.1} parent=0
    _
  %s6 = ssub.s32 1, %s4
  %s7 = scalar_select 0, %s6, %s4
  $region1: #{tpu_custom_call.1} parent=0
    #allocation3 [shape = 'u8[8192]{0}', space=vmem, size = 0x2000, scoped, tag = 'input window, operand 0, single buffered']
    #allocation4 [shape = 's32[1]{0}', space=sflag, size = 0x4, scoped, tag = 'scoped memory for tpu_custom_call.1']
    #allocation5 [shape = 's32[1]{0}', space=sflag, size = 0x4, scoped, tag = 'scoped memory for tpu_custom_call.1']
    #allocation6 [shape = 'u8[65536]{0}', space=vmem, size = 0x10000, scoped, tag = 'input window, operand 1, single buffered']
    #allocation7 [shape = 's32[1]{0}', space=sflag, size = 0x4, scoped, tag = 'scoped memory for tpu_custom_call.1']
    #allocation8 [shape = 'u8[8192]{0}', space=vmem, size = 0x2000, scoped, tag = 'output window, operand 0, single buffered']
    %8 = vsyncpa [#allocation4], 0
    %9 = vsyncpa [#allocation7], 0
    %10 = vsyncpa [#allocation5], 0
    // Predicated region
    $region2: #{tpu_custom_call.1} parent=1 // pred_check
      _
    $region3: #{tpu_custom_call.1} parent=1 // pred_check_branch
      %12 = sbr.rel (0) target = $region5
    $region4: #{tpu_custom_call.1} parent=1 // pred_region
      %s14 = ssub.s32 256, 256
      %15 = vsyncadd [#allocation4], %s14
      %s16 = sshll.u32 [#allocation3], 4
      %s17 = int_to_ptr.vmem [resolvable:$true] %s16
      %22 = dma.hbm_to_vmem [thread:$0]  %s0, 256, %s17, [#allocation4], 128, 128, 8
    $region5: #{tpu_custom_call.1} parent=1 // pred_fallthru
      _
    // Predicated region
    $region6: #{tpu_custom_call.1} parent=1 // pred_check
      _
    $region7: #{tpu_custom_call.1} parent=1 // pred_check_branch
      %24 = sbr.rel (0) target = $region9
    $region8: #{tpu_custom_call.1} parent=1 // pred_region
      %s26 = ssub.s32 2048, 2048
      %27 = vsyncadd [#allocation7], %s26
      %s28 = sshll.u32 [#allocation6], 4
      %s29 = int_to_ptr.vmem [resolvable:$true] %s28
      %34 = dma.hbm_to_vmem [thread:$0]  %s1, 2048, %s29, [#allocation7], 128, 128, 8
    $region9: #{tpu_custom_call.1} parent=1 // pred_fallthru
      _
    // Predicated region
    $region10: #{tpu_custom_call.1} parent=1 // pred_check
      _
    $region11: #{tpu_custom_call.1} parent=1 // pred_check_branch
      %36 = sbr.rel (0) target = $region13
    $region12: #{tpu_custom_call.1} parent=1 // pred_region
      _
    $region13: #{tpu_custom_call.1} parent=1 // pred_fallthru
      _
    // Predicated region
    $region14: #{tpu_custom_call.1} parent=1 // pred_check
      _
    $region15: #{tpu_custom_call.1} parent=1 // pred_check_branch
      %38 = sbr.rel (0) target = $region17
    $region16: #{tpu_custom_call.1} parent=1 // pred_region
      %39 = dma.done [#allocation4], 256
    $region17: #{tpu_custom_call.1} parent=1 // pred_fallthru
      _
    // Predicated region
    $region18: #{tpu_custom_call.1} parent=1 // pred_check
      _
    $region19: #{tpu_custom_call.1} parent=1 // pred_check_branch
      %41 = sbr.rel (0) target = $region21
    $region20: #{tpu_custom_call.1} parent=1 // pred_region
      %42 = dma.done [#allocation7], 2048
    $region21: #{tpu_custom_call.1} parent=1 // pred_fallthru
      _
    %p43 = scmp.eq.s32.totalorder 0, 0
    // Predicated region
    $region22: #{tpu_custom_call.1} parent=1 // pred_check
      %p44 = pneg %p43
    $region23: #{tpu_custom_call.1} parent=1 // pred_check_branch
      %46 = sbr.rel (%p44) target = $region25
    $region24: #{tpu_custom_call.1} parent=1 // pred_region
      %47 = vst [vmem:[#allocation2] sm:$0xff] 0.0
      %48 = vst [vmem:[#allocation2 + $0x8] sm:$0xff] 0.0
    $region25: #{tpu_custom_call.1} parent=1 // pred_fallthru
      _
    %v49 = vld [vmem:[#allocation2] sm:$0xff]
    %v50 = vld [vmem:[#allocation2 + $0x8] sm:$0xff]
    %v51 = vld [vmem:[#allocation3] sm:$0xff]
    %v52 = vld [vmem:[#allocation3 + $0x8] sm:$0xff]
    %v53 = vld [vmem:[#allocation6] sm:$0xff]
    %v54 = vld [vmem:[#allocation6 + $0x8] sm:$0xff]
    %v55 = vld [vmem:[#allocation6 + $0x10] sm:$0xff]
    %v56 = vld [vmem:[#allocation6 + $0x18] sm:$0xff]
    %v57 = vld [vmem:[#allocation6 + $0x20] sm:$0xff]
    %v58 = vld [vmem:[#allocation6 + $0x28] sm:$0xff]
    %v59 = vld [vmem:[#allocation6 + $0x30] sm:$0xff]
    %v60 = vld [vmem:[#allocation6 + $0x38] sm:$0xff]
    %v61 = vld [vmem:[#allocation6 + $0x40] sm:$0xff]
    %v62 = vld [vmem:[#allocation6 + $0x48] sm:$0xff]
    %v63 = vld [vmem:[#allocation6 + $0x50] sm:$0xff]
    %v64 = vld [vmem:[#allocation6 + $0x58] sm:$0xff]
    %v65 = vld [vmem:[#allocation6 + $0x60] sm:$0xff]
    %v66 = vld [vmem:[#allocation6 + $0x68] sm:$0xff]
    %v67 = vld [vmem:[#allocation6 + $0x70] sm:$0xff]
    %v68 = vld [vmem:[#allocation6 + $0x78] sm:$0xff]
    %69 = vmatprep.subr.mxu0 0.0
    %70 = vmatpush1.msra.mxu0 %v53
    %71 = vmatprep.subr.mxu0 0.0
    %72 = vmatpush1.msra.mxu0 %v54
    %73 = vmatprep.subr.mxu0 0.0
    %74 = vmatpush1.msra.mxu0 %v55
    %75 = vmatprep.subr.mxu0 0.0
    %76 = vmatpush1.msra.mxu0 %v56
    %77 = vmatprep.subr.mxu0 0.0
    %78 = vmatpush1.msra.mxu0 %v57
    %79 = vmatprep.subr.mxu0 0.0
    %80 = vmatpush1.msra.mxu0 %v58
    %81 = vmatprep.subr.mxu0 0.0
    %82 = vmatpush1.msra.mxu0 %v59
    %83 = vmatprep.subr.mxu0 0.0
    %84 = vmatpush1.msra.mxu0 %v60
    %85 = vmatprep.subr.mxu0 0.0
    %86 = vmatpush1.msra.mxu0 %v61
    %87 = vmatprep.subr.mxu0 0.0
    %88 = vmatpush1.msra.mxu0 %v62
    %89 = vmatprep.subr.mxu0 0.0
    %90 = vmatpush1.msra.mxu0 %v63
    %91 = vmatprep.subr.mxu0 0.0
    %92 = vmatpush1.msra.mxu0 %v64
    %93 = vmatprep.subr.mxu0 0.0
    %94 = vmatpush1.msra.mxu0 %v65
    %95 = vmatprep.subr.mxu0 0.0
    %96 = vmatpush1.msra.mxu0 %v66
    %97 = vmatprep.subr.mxu0 0.0
    %98 = vmatpush1.msra.mxu0 %v67
    %99 = vmatprep.subr.mxu0 0.0
    %100 = vmatpush1.msra.mxu0 %v68
    %101 = vmatprep.subr.mxu0 0.0
    %102 = vmatpush1.msra.mxu0 0.0
    %103 = vmatprep.subr.mxu0 0.0
    %104 = vmatpush1.msra.mxu0 0.0
    %105 = vmatprep.subr.mxu0 0.0
    %106 = vmatpush1.msra.mxu0 0.0
    %107 = vmatprep.subr.mxu0 0.0
    %108 = vmatpush1.msra.mxu0 0.0
    %109 = vmatprep.subr.mxu0 0.0
    %110 = vmatpush1.msra.mxu0 0.0
    %111 = vmatprep.subr.mxu0 0.0
    %112 = vmatpush1.msra.mxu0 0.0
    %113 = vmatprep.subr.mxu0 0.0
    %114 = vmatpush1.msra.mxu0 0.0
    %115 = vmatprep.subr.mxu0 0.0
    %116 = vmatpush1.msra.mxu0 0.0
    %117 = vmatprep.subr.mxu0 0.0
    %118 = vmatpush1.msra.mxu0 0.0
    %119 = vmatprep.subr.mxu0 0.0
    %120 = vmatpush1.msra.mxu0 0.0
    %121 = vmatprep.subr.mxu0 0.0
    %122 = vmatpush1.msra.mxu0 0.0
    %123 = vmatprep.subr.mxu0 0.0
    %124 = vmatpush1.msra.mxu0 0.0
    %125 = vmatprep.subr.mxu0 0.0
    %126 = vmatpush1.msra.mxu0 0.0
    %127 = vmatprep.subr.mxu0 0.0
    %128 = vmatpush1.msra.mxu0 0.0
    %129 = vmatprep.subr.mxu0 0.0
    %130 = vmatpush1.msra.mxu0 0.0
    %131 = vmatprep.subr.mxu0 0.0
    %132 = vmatpush1.msra.mxu0 0.0
    %133 = vmatprep.mubr.f32.mxu0 0.0
    %134 = vmatmul.mubr.f32.gmra.mrb[0].mxu0 %v51
    %v135 = vpop.f32.mrb[0].mxu0
    %v136 = vadd.f32 0.0, %v135
    %v137 = vpop.f32.mrb[0].mxu0
    %138 = vmatprep.mubr.f32.mxu0 0.0
    %139 = vmatmul.mubr.f32.gmra.mrb[0].mxu0 %v52
    %v140 = vpop.f32.mrb[0].mxu0
    %v141 = vadd.f32 0.0, %v140
    %v142 = vpop.f32.mrb[0].mxu0
    %143 = vdwg.mxu0
    %v144 = vadd.f32 %v49, %v136
    %v145 = vadd.f32 %v50, %v141
    %146 = vst [vmem:[#allocation2] sm:$0xff] %v144
    %147 = vst [vmem:[#allocation2 + $0x8] sm:$0xff] %v145
    // Predicated region
    $region26: #{tpu_custom_call.1} parent=1 // pred_check
      %p148 = pneg %p43
    $region27: #{tpu_custom_call.1} parent=1 // pred_check_branch
      %150 = sbr.rel (%p148) target = $region29
    $region28: #{tpu_custom_call.1} parent=1 // pred_region
      %v151 = vld [vmem:[#allocation2] sm:$0xff]
      %v152 = vld [vmem:[#allocation2 + $0x8] sm:$0xff]
      %v153 = vld [vmem:[%s2] sm:$0x1]
      %v155 = vlaneseq
      %v156 = vshrl.u32 %v155, 7
      %v157 = vsub.s32 0, %v156
      %v158 = vrot.slane %v153, %v157
      %v160 = vadd.f32 %v151, %v158
      %v161 = vadd.f32 %v152, %v158
      %162 = vst [vmem:[#allocation8] sm:$0xff] %v160
      %163 = vst [vmem:[#allocation8 + $0x8] sm:$0xff] %v161
    $region29: #{tpu_custom_call.1} parent=1 // pred_fallthru
      _
    // Predicated region
    $region30: #{tpu_custom_call.1} parent=1 // pred_check
      _
    $region31: #{tpu_custom_call.1} parent=1 // pred_check_branch
      %165 = sbr.rel (0) target = $region33
    $region32: #{tpu_custom_call.1} parent=1 // pred_region
      %s167 = ssub.s32 256, 256
      %168 = vsyncadd [#allocation5], %s167
      %s169 = sshll.u32 [#allocation8], 4
      %s170 = int_to_ptr.vmem [resolvable:$true] %s169
      %175 = dma.vmem_to_hbm [thread:$0]  %s170, 256, %s3, [#allocation5], 128, 128, 8
    $region33: #{tpu_custom_call.1} parent=1 // pred_fallthru
      _
    // Predicated region
    $region34: #{tpu_custom_call.1} parent=1 // pred_check
      _
    $region35: #{tpu_custom_call.1} parent=1 // pred_check_branch
      %177 = sbr.rel (0) target = $region37
    $region36: #{tpu_custom_call.1} parent=1 // pred_region
      %178 = dma.done [#allocation5], 256
    $region37: #{tpu_custom_call.1} parent=1 // pred_fallthru
      _
    %179 = vsyncpa [#allocation4], 1
    %180 = vsyncpa [#allocation7], 1
    %181 = vsyncpa [#allocation5], 1

</llo_original>
